<compile_context>
chip_gen: v7x
topology: tpu7x:2x2x1
jax: 0.10.0
libtpu: 0.0.40
codegen_flags: <defaults>
</compile_context>

<pallas_src>
import functools

import jax
import jax.numpy as jnp
import numpy as np
from jax import lax
from jax.experimental import pallas as pl
from jax.experimental.pallas import tpu as pltpu


def _round_up(x, m):
    return ((x + m - 1) // m) * m


# --------------------------------------------------------------------------- #
# Kernel
# --------------------------------------------------------------------------- #
def _token_info_nce_kernel(g_ref, p_ref, qlab_ref, klab_ref, kmask_ref,
                           out_ref, lpos_sc, lden_sc):
    # g_ref:     (tq, D)  query features, already L2-normalized AND scaled by 1/T
    # p_ref:     (tk, D)  key features, already L2-normalized
    # qlab_ref:  (tq, 1)  i32 query labels (-1 for padded query rows)
    # klab_ref:  (1, tk)  i32 key labels   (-2 for padded key columns)
    # kmask_ref: (1, tk)  f32 additive key mask (0 real, -1e30 pad)
    # out_ref:   (tq, 1)  f32 per-query-row loss (denominator - nominator)
    # lpos_sc / lden_sc: (tq, 1) f32 running un-shifted exp-sums
    ki = pl.program_id(1)

    @pl.when(ki == 0)
    def _():
        lpos_sc[...] = jnp.zeros_like(lpos_sc)
        lden_sc[...] = jnp.zeros_like(lden_sc)

    # s = dist / T directly (the 1/T scale was folded into the query features
    # in the wrapper).  NT dot: contract the feature dims on the MXU with f32
    # accumulation; no materialized transpose of the key tile.
    s = lax.dot_general(g_ref[...], p_ref[...], (((1,), (1,)), ((), ())),
                        preferred_element_type=jnp.float32)      # (tq, tk)

    # Single exp per step.  |s| <= 1/T so the un-shifted exp never overflows
    # (requires T > ~0.012; default T = 0.1).  Padded key columns carry -1e30
    # through kmask, so e == 0.0 there exactly.
    e = jnp.exp(s + kmask_ref[...])                              # (tq, tk)
    eq = qlab_ref[...] == klab_ref[...]                          # (tq, tk)

    lden_sc[...] += jnp.sum(e, axis=-1, keepdims=True)
    lpos_sc[...] += jnp.sum(jnp.where(eq, e, 0.0), axis=-1, keepdims=True)

    @pl.when(ki == pl.num_programs(1) - 1)
    def _():
        # denominator - nominator.  Every real query row has at least one
        # matching key (its own parts), so lpos > 0 for all rows we keep.
        out_ref[...] = jnp.log(lden_sc[...]) - jnp.log(lpos_sc[...])


# --------------------------------------------------------------------------- #
# Tiling / hardware heuristics
# --------------------------------------------------------------------------- #
def _tpu_flavor():
    """(dual_tensorcore_chip, per-core VMEM budget in bytes)."""
    kind = ""
    try:
        kind = jax.devices()[0].device_kind.lower()
    except Exception:
        pass
    dual_tc = ("v7" in kind) or ("7x" in kind)
    if ("v5" in kind) or ("v6" in kind):
        budget = 96 << 20            # 128 MiB physical per TC -> generous tiles
    else:
        budget = 44 << 20            # conservative (v7x: 64 MiB per TC)
    return dual_tc, budget


def _choose_tiles(B, N, D, feat_bytes, dual_tc, vmem_budget):
    # Key tile: lane axis of every (tq, tk) op -> keep it a multiple of 128 so
    # the exp / where / reductions are fully lane-dense.
    tk = _round_up(min(max(N, 1), 512), 128)

    # Query tile.
    B8 = _round_up(max(B, 1), 8)
    if B8 <= 8:
        tq = B8
    elif dual_tc and B8 <= 1024:
        # v7x: guarantee n_q >= 2 so the "parallel" query axis feeds both TCs.
        tq = _round_up(pl.cdiv(B8, 2), 8)
    else:
        # v5e/v6e (single TC): big tq -> fewer HBM passes over the key stream.
        tq = min(512, B8)

    def est(q, k):
        return (2 * (q + k) * D * feat_bytes        # double-buffered feature tiles
                + 2 * (q * 4 + 2 * k * 4)           # label / mask tiles
                + 4 * q * 4                         # output + accumulators
                + 6 * q * k * 4)                    # in-flight (tq, tk) f32 temps

    # Shrink tiles (rather than just capping vmem_limit_bytes) until they fit.
    while est(tq, tk) > vmem_budget and tk > 128:
        tk = _round_up(tk // 2, 128)
    while est(tq, tk) > vmem_budget and tq > 8:
        tq = max(8, _round_up(tq // 2, 8))

    return tq, tk, est(tq, tk)


# --------------------------------------------------------------------------- #
# Wrapper
# --------------------------------------------------------------------------- #
def token_info_nce(global_feat, part_feat, labels, T=0.1):
    """Pallas implementation of TokenInfoNCE.forward.

    global_feat: (B, D) float
    part_feat:   (B, PART_NUM, D) float
    labels:      (B,) int
    returns scalar float32 loss
    """
    B, P, D = part_feat.shape
    N = B * P
    inv_T = 1.0 / float(T)

    # HBM storage dtype: keep bf16 inputs at 2 bytes/elem (halves the dominant
    # key-feature re-stream); otherwise use exact f32.
    if global_feat.dtype == jnp.bfloat16 and part_feat.dtype == jnp.bfloat16:
        store_dtype = jnp.bfloat16
    else:
        store_dtype = jnp.float32

    # ---- normalization fused into the wrapper (done once, in XLA) ----------
    # F.normalize(dim=-1, eps=1e-12): x / max(||x||, 1e-12).
    eps = 1e-12
    g32 = global_feat.astype(jnp.float32)
    p32 = part_feat.astype(jnp.float32).reshape(N, D)
    gn = g32 / jnp.maximum(jnp.linalg.norm(g32, axis=-1, keepdims=True), eps)
    pn = p32 / jnp.maximum(jnp.linalg.norm(p32, axis=-1, keepdims=True), eps)
    gn = gn * inv_T                      # fold 1/T into the query side once

    dual_tc, vmem_budget = _tpu_flavor()
    feat_bytes = jnp.dtype(store_dtype).itemsize
    tq, tk, est = _choose_tiles(B, N, D, feat_bytes, dual_tc, vmem_budget)
    B_pad = _round_up(_round_up(B, 8), tq)
    N_pad = _round_up(N, tk)
    n_q, n_k = B_pad // tq, N_pad // tk

    # ---- layout glue (pure pad/reshape; queries are NOT repeated) ----------
    g_pad = jnp.pad(gn.astype(store_dtype), ((0, B_pad - B), (0, 0)))
    p_pad = jnp.pad(pn.astype(store_dtype), ((0, N_pad - N), (0, 0)))

    lab = labels.astype(jnp.int32)
    qlab = jnp.pad(lab.reshape(B, 1), ((0, B_pad - B), (0, 0)),
                   constant_values=-1)
    klab = jnp.pad(jnp.repeat(lab, P).reshape(1, N), ((0, 0), (0, N_pad - N)),
                   constant_values=-2)
    kmask = jnp.pad(jnp.zeros((1, N), jnp.float32), ((0, 0), (0, N_pad - N)),
                    constant_values=-1e30)

    vmem_limit = int(min(vmem_budget, max(2 * est + (8 << 20), 32 << 20)))

    out = pl.pallas_call(
        _token_info_nce_kernel,
        out_shape=jax.ShapeDtypeStruct((B_pad, 1), jnp.float32),
        grid_spec=pltpu.PrefetchScalarGridSpec(
            num_scalar_prefetch=0,
            grid=(n_q, n_k),
            in_specs=[
                pl.BlockSpec((tq, D), lambda qi, ki: (qi, 0)),   # query feats
                pl.BlockSpec((tk, D), lambda qi, ki: (ki, 0)),   # key feats
                pl.BlockSpec((tq, 1), lambda qi, ki: (qi, 0)),   # query labels
                pl.BlockSpec((1, tk), lambda qi, ki: (0, ki)),   # key labels
                pl.BlockSpec((1, tk), lambda qi, ki: (0, ki)),   # key pad mask
            ],
            out_specs=pl.BlockSpec((tq, 1), lambda qi, ki: (qi, 0)),
            scratch_shapes=[pltpu.VMEM((tq, 1), jnp.float32),    # pos exp-sum
                            pltpu.VMEM((tq, 1), jnp.float32)],   # denom exp-sum
        ),
        compiler_params=pltpu.CompilerParams(
            dimension_semantics=("parallel", "arbitrary"),
            vmem_limit_bytes=vmem_limit,
        ),
    )(g_pad, p_pad, qlab, klab, kmask)

    # mean over the B*P repeated rows == mean over the B distinct rows
    return jnp.sum(out[:B, 0]) / B


# --------------------------------------------------------------------------- #
# Pure-JAX reference mirroring the PyTorch code exactly
# --------------------------------------------------------------------------- #
def token_info_nce_ref(global_feat, part_feat, labels, T=0.1):
    eps = 1e-12
    g = global_feat.astype(jnp.float32)
    p = part_feat.astype(jnp.float32)
    g = g / jnp.maximum(jnp.linalg.norm(g, axis=-1, keepdims=True), eps)
    p = p / jnp.maximum(jnp.linalg.norm(p, axis=-1, keepdims=True), eps)
    B, P, D = part_feat.shape
    g = jnp.repeat(g, P, axis=0)
    p = p.reshape(B * P, D)
    lab = jnp.repeat(labels, P)
    dist = g @ p.T
    eq = lab[None, :] == lab[:, None]
    pos_dist = (dist + jnp.where(eq, 0.0, -10000.0)) / T
    neg_dist = (dist + jnp.where(eq, -10000.0, 0.0)) / T
    nominator = jax.scipy.special.logsumexp(pos_dist, axis=-1)
    denominator = jnp.log(jnp.exp(pos_dist).sum(-1) + jnp.exp(neg_dist).sum(-1))
    return jnp.mean(denominator - nominator)


if __name__ == "__main__":
    key = jax.random.PRNGKey(0)
    kg, kp, kl = jax.random.split(key, 3)

    B, PART_NUM, D = 4, 2, 32
    global_feat = jax.random.normal(kg, (B, D), dtype=jnp.float32)
    part_feat = jax.random.normal(kp, (B, PART_NUM, D), dtype=jnp.float32)
    labels = jax.random.randint(kl, (B,), 0, 2, dtype=jnp.int32)

    loss = token_info_nce(global_feat, part_feat, labels, T=0.1)
    loss = jax.block_until_ready(loss)

    ref = jax.block_until_ready(
        token_info_nce_ref(global_feat, part_feat, labels, T=0.1))
    np.testing.assert_allclose(np.asarray(loss), np.asarray(ref),
                               rtol=1e-4, atol=1e-4)

    print("KERNEL_OK")
</pallas_src>

<mosaic_0001>
module attributes {stable_mosaic.version = 11 : i64} {
  func.func @_token_info_nce_kernel(%arg0: i32, %arg1: i32, %arg2: memref<8x32xf32, #tpu.memory_space<vmem>>, %arg3: memref<128x32xf32, #tpu.memory_space<vmem>>, %arg4: memref<8x1xi32, #tpu.memory_space<vmem>>, %arg5: memref<1x128xi32, #tpu.memory_space<vmem>>, %arg6: memref<1x128xf32, #tpu.memory_space<vmem>>, %arg7: memref<8x1xf32, #tpu.memory_space<vmem>>, %arg8: memref<8x1xf32, #tpu.memory_space<vmem>>, %arg9: memref<8x1xf32, #tpu.memory_space<vmem>>) attributes {dimension_semantics = [#tpu.dimension_semantics<parallel>, #tpu.dimension_semantics<arbitrary>], iteration_bounds = array<i64: 1, 1>, scalar_prefetch = 0 : i64, scratch_operands = 2 : i64, tpu.core_type = #tpu.core_type<tc>, window_params = [{transform_indices = @transform_0, window_bounds = array<i64: 8, 32>}, {transform_indices = @transform_1, window_bounds = array<i64: 128, 32>}, {transform_indices = @transform_2, window_bounds = array<i64: 8, 1>}, {transform_indices = @transform_3, window_bounds = array<i64: 1, 128>}, {transform_indices = @transform_4, window_bounds = array<i64: 1, 128>}, {transform_indices = @transform_5, window_bounds = array<i64: 8, 1>}]} {
    %c0_i32 = arith.constant 0 : i32
    %0 = arith.cmpi eq, %arg1, %c0_i32 : i32
    %1 = arith.extui %0 : i1 to i32
    %c0_i32_0 = arith.constant 0 : i32
    %2 = arith.cmpi ne, %1, %c0_i32_0 : i32
    scf.if %2 {
      %cst_23 = arith.constant 0.000000e+00 : f32
      %30 = vector.broadcast %cst_23 : f32 to vector<8x1xf32>
      %c0_24 = arith.constant 0 : index
      %c0_25 = arith.constant 0 : index
      %31 = vector.load %arg8[%c0_24, %c0_25] : memref<8x1xf32, #tpu.memory_space<vmem>>, vector<8x1xf32>
      tpu.vector_store %arg8[%c0_24, %c0_25], %30 {strides = array<i32>} : memref<8x1xf32, #tpu.memory_space<vmem>>, vector<8x1xf32>,
      %cst_26 = arith.constant 0.000000e+00 : f32
      %32 = vector.broadcast %cst_26 : f32 to vector<8x1xf32>
      %c0_27 = arith.constant 0 : index
      %c0_28 = arith.constant 0 : index
      %33 = vector.load %arg9[%c0_27, %c0_28] : memref<8x1xf32, #tpu.memory_space<vmem>>, vector<8x1xf32>
      tpu.vector_store %arg9[%c0_27, %c0_28], %32 {strides = array<i32>} : memref<8x1xf32, #tpu.memory_space<vmem>>, vector<8x1xf32>,
    } else {
    }
    %c0 = arith.constant 0 : index
    %c0_1 = arith.constant 0 : index
    %3 = vector.load %arg2[%c0, %c0_1] : memref<8x32xf32, #tpu.memory_space<vmem>>, vector<8x32xf32>
    %c0_2 = arith.constant 0 : index
    %c0_3 = arith.constant 0 : index
    %4 = vector.load %arg3[%c0_2, %c0_3] : memref<128x32xf32, #tpu.memory_space<vmem>>, vector<128x32xf32>
    %cst = arith.constant dense<0.000000e+00> : vector<8x128xf32>
    %5 = tpu.matmul %3, %4, %cst {dimension_numbers = #tpu.dot_dimension_numbers<[1], [1], [0], [0], [0, 0, 1, 0], [], []>} : vector<8x32xf32>, vector<128x32xf32>, vector<8x128xf32> -> vector<8x128xf32>
    %c0_4 = arith.constant 0 : index
    %c0_5 = arith.constant 0 : index
    %6 = vector.load %arg6[%c0_4, %c0_5] : memref<1x128xf32, #tpu.memory_space<vmem>>, vector<1x128xf32>
    %7 = vector.broadcast %6 : vector<1x128xf32> to vector<8x128xf32>
    %8 = arith.addf %5, %7 : vector<8x128xf32>
    %9 = math.exp %8 : vector<8x128xf32>
    %c0_6 = arith.constant 0 : index
    %c0_7 = arith.constant 0 : index
    %10 = vector.load %arg4[%c0_6, %c0_7] : memref<8x1xi32, #tpu.memory_space<vmem>>, vector<8x1xi32>
    %c0_8 = arith.constant 0 : index
    %c0_9 = arith.constant 0 : index
    %11 = vector.load %arg5[%c0_8, %c0_9] : memref<1x128xi32, #tpu.memory_space<vmem>>, vector<1x128xi32>
    %12 = vector.broadcast %10 : vector<8x1xi32> to vector<8x128xi32>
    %13 = vector.broadcast %11 : vector<1x128xi32> to vector<8x128xi32>
    %14 = arith.cmpi eq, %12, %13 : vector<8x128xi32>
    %c0_10 = arith.constant 0 : index
    %c0_11 = arith.constant 0 : index
    %15 = vector.load %arg9[%c0_10, %c0_11] : memref<8x1xf32, #tpu.memory_space<vmem>>, vector<8x1xf32>
    %cst_12 = arith.constant dense<0.000000e+00> : vector<8xf32>
    %16 = vector.multi_reduction <add>, %9, %cst_12 [1] : vector<8x128xf32> to vector<8xf32>
    %17 = vector.shape_cast %16 : vector<8xf32> to vector<8x1xf32>
    %18 = arith.addf %15, %17 : vector<8x1xf32>
    %c0_13 = arith.constant 0 : index
    %c0_14 = arith.constant 0 : index
    %19 = vector.load %arg9[%c0_13, %c0_14] : memref<8x1xf32, #tpu.memory_space<vmem>>, vector<8x1xf32>
    tpu.vector_store %arg9[%c0_13, %c0_14], %18 {strides = array<i32>} : memref<8x1xf32, #tpu.memory_space<vmem>>, vector<8x1xf32>,
    %c0_15 = arith.constant 0 : index
    %c0_16 = arith.constant 0 : index
    %20 = vector.load %arg8[%c0_15, %c0_16] : memref<8x1xf32, #tpu.memory_space<vmem>>, vector<8x1xf32>
    %cst_17 = arith.constant 0.000000e+00 : f32
    %21 = vector.broadcast %cst_17 : f32 to vector<8x128xf32>
    %22 = arith.select %14, %9, %21 : vector<8x128xi1>, vector<8x128xf32>
    %cst_18 = arith.constant dense<0.000000e+00> : vector<8xf32>
    %23 = vector.multi_reduction <add>, %22, %cst_18 [1] : vector<8x128xf32> to vector<8xf32>
    %24 = vector.shape_cast %23 : vector<8xf32> to vector<8x1xf32>
    %25 = arith.addf %20, %24 : vector<8x1xf32>
    %c0_19 = arith.constant 0 : index
    %c0_20 = arith.constant 0 : index
    %26 = vector.load %arg8[%c0_19, %c0_20] : memref<8x1xf32, #tpu.memory_space<vmem>>, vector<8x1xf32>
    tpu.vector_store %arg8[%c0_19, %c0_20], %25 {strides = array<i32>} : memref<8x1xf32, #tpu.memory_space<vmem>>, vector<8x1xf32>,
    %c0_i32_21 = arith.constant 0 : i32
    %27 = arith.cmpi eq, %arg1, %c0_i32_21 : i32
    %28 = arith.extui %27 : i1 to i32
    %c0_i32_22 = arith.constant 0 : i32
    %29 = arith.cmpi ne, %28, %c0_i32_22 : i32
    scf.if %29 {
      %c0_23 = arith.constant 0 : index
      %c0_24 = arith.constant 0 : index
      %30 = vector.load %arg9[%c0_23, %c0_24] : memref<8x1xf32, #tpu.memory_space<vmem>>, vector<8x1xf32>
      %31 = math.log %30 : vector<8x1xf32>
      %c0_25 = arith.constant 0 : index
      %c0_26 = arith.constant 0 : index
      %32 = vector.load %arg8[%c0_25, %c0_26] : memref<8x1xf32, #tpu.memory_space<vmem>>, vector<8x1xf32>
      %33 = math.log %32 : vector<8x1xf32>
      %34 = arith.subf %31, %33 : vector<8x1xf32>
      %c0_27 = arith.constant 0 : index
      %c0_28 = arith.constant 0 : index
      %35 = vector.load %arg7[%c0_27, %c0_28] : memref<8x1xf32, #tpu.memory_space<vmem>>, vector<8x1xf32>
      tpu.vector_store %arg7[%c0_27, %c0_28], %34 {strides = array<i32>} : memref<8x1xf32, #tpu.memory_space<vmem>>, vector<8x1xf32>,
    } else {
    }
    return
  }
  func.func @transform_0(%arg0: i32, %arg1: i32) -> (i32, i32) {
    %c0_i32 = arith.constant 0 : i32
    %c0_i32_0 = arith.constant 0 : i32
    return %arg0, %c0_i32 : i32, i32
  }
  func.func @transform_1(%arg0: i32, %arg1: i32) -> (i32, i32) {
    %c0_i32 = arith.constant 0 : i32
    %c0_i32_0 = arith.constant 0 : i32
    return %arg1, %c0_i32 : i32, i32
  }
  func.func @transform_2(%arg0: i32, %arg1: i32) -> (i32, i32) {
    %c0_i32 = arith.constant 0 : i32
    %c0_i32_0 = arith.constant 0 : i32
    return %arg0, %c0_i32 : i32, i32
  }
  func.func @transform_3(%arg0: i32, %arg1: i32) -> (i32, i32) {
    %c0_i32 = arith.constant 0 : i32
    %c0_i32_0 = arith.constant 0 : i32
    return %c0_i32, %arg1 : i32, i32
  }
  func.func @transform_4(%arg0: i32, %arg1: i32) -> (i32, i32) {
    %c0_i32 = arith.constant 0 : i32
    %c0_i32_0 = arith.constant 0 : i32
    return %c0_i32, %arg1 : i32, i32
  }
  func.func @transform_5(%arg0: i32, %arg1: i32) -> (i32, i32) {
    %c0_i32 = arith.constant 0 : i32
    %c0_i32_0 = arith.constant 0 : i32
    return %arg0, %c0_i32 : i32, i32
  }
}

</mosaic_0001>

<llo_original>
// kernel: tpu_custom_call.1
$region0: #{tpu_custom_call.1}
  #allocation0 [shape = 'u32[]', space=smem, size = 0x4, offset = 0x4, fixed_abs, tag = 'smem constant byte address 0x4 - core index']
  #allocation1 [shape = 'u32[144,128]{1,0:T(1,128)}', space=vmem, size = 0x12000, scoped, tag = 'internal scratch']
  #allocation2 [shape = 'f32[8,1]{1,0:T(8,128)}', space=vmem, size = 0x1000, scoped, tag = 'scratch operand']
  #allocation3 [shape = 'f32[8,1]{1,0:T(8,128)}', space=vmem, size = 0x1000, scoped, tag = 'scratch operand']
  %s0 = inlined_call_operand.vmem [shape: f32[8,32], index: 0, kind: input, shape index: {}]
  %s1 = inlined_call_operand.vmem [shape: f32[128,32], index: 1, kind: input, shape index: {}]
  %s2 = inlined_call_operand.vmem [shape: s32[8,1], index: 2, kind: input, shape index: {}]
  %s3 = inlined_call_operand.vmem [shape: s32[1,128], index: 3, kind: input, shape index: {}]
  %s4 = inlined_call_operand.vmem [shape: f32[1,128], index: 4, kind: input, shape index: {}]
  %s5 = inlined_call_operand.vmem [shape: f32[8,1], index: 5, kind: output, shape index: {}]
  %s6 = sld [smem:[#allocation0]]
  $region38: #{tpu_custom_call.1} parent=0
    _
  %s8 = ssub.s32 1, %s6
  %s9 = scalar_select 0, %s8, %s6
  // Predicated region
  $region2: #{tpu_custom_call.1} parent=0 // pred_check
    _
  $region3: #{tpu_custom_call.1} parent=0 // pred_check_branch
    %11 = sbr.rel (0) target = $region5
  $region4: #{tpu_custom_call.1} parent=0 // pred_region
    _
  $region5: #{tpu_custom_call.1} parent=0 // pred_fallthru
    _
  // Predicated region
  $region6: #{tpu_custom_call.1} parent=0 // pred_check
    _
  $region7: #{tpu_custom_call.1} parent=0 // pred_check_branch
    %13 = sbr.rel (0) target = $region9
  $region8: #{tpu_custom_call.1} parent=0 // pred_region
    _
  $region9: #{tpu_custom_call.1} parent=0 // pred_fallthru
    _
  // Predicated region
  $region10: #{tpu_custom_call.1} parent=0 // pred_check
    _
  $region11: #{tpu_custom_call.1} parent=0 // pred_check_branch
    %15 = sbr.rel (0) target = $region13
  $region12: #{tpu_custom_call.1} parent=0 // pred_region
    _
  $region13: #{tpu_custom_call.1} parent=0 // pred_fallthru
    _
  // Predicated region
  $region14: #{tpu_custom_call.1} parent=0 // pred_check
    _
  $region15: #{tpu_custom_call.1} parent=0 // pred_check_branch
    %17 = sbr.rel (0) target = $region17
  $region16: #{tpu_custom_call.1} parent=0 // pred_region
    _
  $region17: #{tpu_custom_call.1} parent=0 // pred_fallthru
    _
  // Predicated region
  $region18: #{tpu_custom_call.1} parent=0 // pred_check
    _
  $region19: #{tpu_custom_call.1} parent=0 // pred_check_branch
    %19 = sbr.rel (0) target = $region21
  $region20: #{tpu_custom_call.1} parent=0 // pred_region
    _
  $region21: #{tpu_custom_call.1} parent=0 // pred_fallthru
    _
  %p20 = scmp.eq.s32.totalorder 0, 0
  // Predicated region
  $region22: #{tpu_custom_call.1} parent=0 // pred_check
    %p21 = pneg %p20
  $region23: #{tpu_custom_call.1} parent=0 // pred_check_branch
    %23 = sbr.rel (%p21) target = $region25
  $region24: #{tpu_custom_call.1} parent=0 // pred_region
    %vm24 = vcmask 7168
    %25 = vst.msk [vmem:[#allocation2] sm:$0xff] %vm24, 0.0
    %26 = vst.msk [vmem:[#allocation3] sm:$0xff] %vm24, 0.0
  $region25: #{tpu_custom_call.1} parent=0 // pred_fallthru
    _
  %v27 = vld [vmem:[%s0] sm:$0xff]
  %v28 = vld [vmem:[%s1] sm:$0xff]
  %v29 = vld [vmem:[%s1 + $0x8] sm:$0xff]
  %v30 = vld [vmem:[%s1 + $0x10] sm:$0xff]
  %v31 = vld [vmem:[%s1 + $0x18] sm:$0xff]
  %v32 = vld [vmem:[%s1 + $0x20] sm:$0xff]
  %v33 = vld [vmem:[%s1 + $0x28] sm:$0xff]
  %v34 = vld [vmem:[%s1 + $0x30] sm:$0xff]
  %v35 = vld [vmem:[%s1 + $0x38] sm:$0xff]
  %v36 = vld [vmem:[%s1 + $0x40] sm:$0xff]
  %v37 = vld [vmem:[%s1 + $0x48] sm:$0xff]
  %v38 = vld [vmem:[%s1 + $0x50] sm:$0xff]
  %v39 = vld [vmem:[%s1 + $0x58] sm:$0xff]
  %v40 = vld [vmem:[%s1 + $0x60] sm:$0xff]
  %v41 = vld [vmem:[%s1 + $0x68] sm:$0xff]
  %v42 = vld [vmem:[%s1 + $0x70] sm:$0xff]
  %v43 = vld [vmem:[%s1 + $0x78] sm:$0xff]
  %v44 = vld [vmem:[%s4] sm:$0x1]
  %v46 = vlaneseq
  %v47 = vshrl.u32 %v46, 7
  %v48 = vsub.s32 0, %v47
  %v49 = vrot.slane %v44, %v48
  %vm51 = vcmask 261120
  %v53 = vsel %vm51, %v27, 0
  %v56 = vsel %vm51, %v28, 0
  %v59 = vsel %vm51, %v29, 0
  %v62 = vsel %vm51, %v30, 0
  %v65 = vsel %vm51, %v31, 0
  %v68 = vsel %vm51, %v32, 0
  %v71 = vsel %vm51, %v33, 0
  %v74 = vsel %vm51, %v34, 0
  %v77 = vsel %vm51, %v35, 0
  %v80 = vsel %vm51, %v36, 0
  %v83 = vsel %vm51, %v37, 0
  %v86 = vsel %vm51, %v38, 0
  %v89 = vsel %vm51, %v39, 0
  %v92 = vsel %vm51, %v40, 0
  %v95 = vsel %vm51, %v41, 0
  %v98 = vsel %vm51, %v42, 0
  %v101 = vsel %vm51, %v43, 0
  %103 = vmatprep.subr.mxu0 0.0
  %104 = vmatpush1.xpose.msra.mxu0 %v56
  %105 = vmatprep.subr.mxu0 0.0
  %106 = vmatpush1.xpose.msra.mxu0 %v59
  %107 = vmatprep.subr.mxu0 0.0
  %108 = vmatpush1.xpose.msra.mxu0 %v62
  %109 = vmatprep.subr.mxu0 0.0
  %110 = vmatpush1.xpose.msra.mxu0 %v65
  %111 = vmatprep.subr.mxu0 0.0
  %112 = vmatpush1.xpose.msra.mxu0 %v68
  %113 = vmatprep.subr.mxu0 0.0
  %114 = vmatpush1.xpose.msra.mxu0 %v71
  %115 = vmatprep.subr.mxu0 0.0
  %116 = vmatpush1.xpose.msra.mxu0 %v74
  %117 = vmatprep.subr.mxu0 0.0
  %118 = vmatpush1.xpose.msra.mxu0 %v77
  %119 = vmatprep.subr.mxu0 0.0
  %120 = vmatpush1.xpose.msra.mxu0 %v80
  %121 = vmatprep.subr.mxu0 0.0
  %122 = vmatpush1.xpose.msra.mxu0 %v83
  %123 = vmatprep.subr.mxu0 0.0
  %124 = vmatpush1.xpose.msra.mxu0 %v86
  %125 = vmatprep.subr.mxu0 0.0
  %126 = vmatpush1.xpose.msra.mxu0 %v89
  %127 = vmatprep.subr.mxu0 0.0
  %128 = vmatpush1.xpose.msra.mxu0 %v92
  %129 = vmatprep.subr.mxu0 0.0
  %130 = vmatpush1.xpose.msra.mxu0 %v95
  %131 = vmatprep.subr.mxu0 0.0
  %132 = vmatpush1.xpose.msra.mxu0 %v98
  %133 = vmatprep.subr.mxu0 0.0
  %134 = vmatpush1.xpose.msra.mxu0 %v101
  %135 = vmatprep.subr.mxu0 0.0
  %136 = vmatpush1.xpose.msra.mxu0 0.0
  %137 = vmatprep.subr.mxu0 0.0
  %138 = vmatpush1.xpose.msra.mxu0 0.0
  %139 = vmatprep.subr.mxu0 0.0
  %140 = vmatpush1.xpose.msra.mxu0 0.0
  %141 = vmatprep.subr.mxu0 0.0
  %142 = vmatpush1.xpose.msra.mxu0 0.0
  %143 = vmatprep.subr.mxu0 0.0
  %144 = vmatpush1.xpose.msra.mxu0 0.0
  %145 = vmatprep.subr.mxu0 0.0
  %146 = vmatpush1.xpose.msra.mxu0 0.0
  %147 = vmatprep.subr.mxu0 0.0
  %148 = vmatpush1.xpose.msra.mxu0 0.0
  %149 = vmatprep.subr.mxu0 0.0
  %150 = vmatpush1.xpose.msra.mxu0 0.0
  %151 = vmatprep.subr.mxu0 0.0
  %152 = vmatpush1.xpose.msra.mxu0 0.0
  %153 = vmatprep.subr.mxu0 0.0
  %154 = vmatpush1.xpose.msra.mxu0 0.0
  %155 = vmatprep.subr.mxu0 0.0
  %156 = vmatpush1.xpose.msra.mxu0 0.0
  %157 = vmatprep.subr.mxu0 0.0
  %158 = vmatpush1.xpose.msra.mxu0 0.0
  %159 = vmatprep.subr.mxu0 0.0
  %160 = vmatpush1.xpose.msra.mxu0 0.0
  %161 = vmatprep.subr.mxu0 0.0
  %162 = vmatpush1.xpose.msra.mxu0 0.0
  %163 = vmatprep.subr.mxu0 0.0
  %164 = vmatpush1.xpose.msra.mxu0 0.0
  %165 = vmatprep.subr.mxu0 0.0
  %166 = vmatpush1.xpose.msra.mxu0 0.0
  %167 = vmatprep.mubr.f32.mxu0 0.0
  %168 = vmatmul.mubr.f32.gmra.mrb[0].mxu0 %v53
  %v169 = vpop.f32.mrb[0].mxu0
  %v170 = vadd.f32 %v49, %v169
  %v171 = vpop.f32.mrb[0].mxu0
  %172 = vdwg.mxu0
  %v173 = vmul.f32 %v170, 1.442695
  %v174 = vpow.pop %v173
  %v175 = vld [vmem:[%s2] sm:$0xff]
  %v176 = vld [vmem:[%s3] sm:$0x1]
  %177 = vset.pattern.permute.xlu0 0
  %178 = vperm.xlu0 %177, %v175
  %v179 = vpop.permute.xlu0 %178
  %v180 = vlaneseq
  %v181 = vshrl.u32 %v180, 7
  %v182 = vsub.s32 0, %v181
  %v183 = vrot.slane %v176, %v182
  %vm184 = vcmp.eq.s32.totalorder %v179, %v183
  %v185 = vld [vmem:[#allocation3] sm:$0xff]
  %186 = vadd.xlane.f32.xlu0 %v174
  %v187 = vpop.xlane.xlu0 %186
  %v188 = vadd.f32 %v185, %v187
  %vm189 = vcmask 7168
  %190 = vst.msk [vmem:[#allocation3] sm:$0xff] %vm189, %v188
  %v191 = vld [vmem:[#allocation2] sm:$0xff]
  %v192 = vsel %vm184, %v174, 0.0
  %193 = vadd.xlane.f32.xlu0 %v192
  %v194 = vpop.xlane.xlu0 %193
  %v195 = vadd.f32 %v191, %v194
  %196 = vst.msk [vmem:[#allocation2] sm:$0xff] %vm189, %v195
  // Predicated region
  $region26: #{tpu_custom_call.1} parent=0 // pred_check
    %p197 = pneg %p20
  $region27: #{tpu_custom_call.1} parent=0 // pred_check_branch
    %199 = sbr.rel (%p197) target = $region29
  $region28: #{tpu_custom_call.1} parent=0 // pred_region
    %v200 = vld [vmem:[#allocation3] sm:$0xff]
    %v201 = vlog2.pop %v200
    %v202 = vmul.f32 %v201, 0.6931472
    %v203 = vld [vmem:[#allocation2] sm:$0xff]
    %v204 = vlog2.pop %v203
    %v205 = vmul.f32 %v204, 0.6931472
    %v206 = vsub.f32 %v202, %v205
    %207 = vst.msk [vmem:[%s5] sm:$0xff] %vm189, %v206
  $region29: #{tpu_custom_call.1} parent=0 // pred_fallthru
    _
  // Predicated region
  $region30: #{tpu_custom_call.1} parent=0 // pred_check
    _
  $region31: #{tpu_custom_call.1} parent=0 // pred_check_branch
    %209 = sbr.rel (0) target = $region33
  $region32: #{tpu_custom_call.1} parent=0 // pred_region
    _
  $region33: #{tpu_custom_call.1} parent=0 // pred_fallthru
    _
  // Predicated region
  $region34: #{tpu_custom_call.1} parent=0 // pred_check
    _
  $region35: #{tpu_custom_call.1} parent=0 // pred_check_branch
    %211 = sbr.rel (0) target = $region37
  $region36: #{tpu_custom_call.1} parent=0 // pred_region
    _
  $region37: #{tpu_custom_call.1} parent=0 // pred_fallthru
    _

</llo_original>
